<compile_context>
chip_gen: v7x
topology: tpu7x:2x2x1
jax: 0.10.0
libtpu: 0.0.40
codegen_flags: <defaults>
</compile_context>

<pallas_src>
import math

import jax
import jax.numpy as jnp
import numpy as np
from jax.experimental import pallas as pl
from jax.experimental.pallas import tpu as pltpu


def _round_up(x, m):
    return ((x + m - 1) // m) * m


# ---------------------------------------------------------------------------
# Pallas kernel: project -> LayerNorm -> ReLU -> reverse embed -> fused softmax
# ---------------------------------------------------------------------------
def decoder_kernel(z_ref, wp_ref, bp_ref, wr_ref, br_ref, cmask_ref, segp_ref,
                   latent_ref, out_ref):
    # z_ref      : (TILE_N, F)        bf16
    # wp_ref     : (F, H*F)           bf16  packed projection weights
    # bp_ref     : (1, H*F)           f32   packed projection biases
    # wr_ref     : (H*F, HO_pad)      bf16  block-diagonal reverse-embedding weights
    # br_ref     : (1, HO_pad)        f32   packed (zero-padded) reverse-embedding biases
    # cmask_ref  : (1, HO_pad)        f32   1.0 on valid categorical lanes, else 0.0
    # segp_ref   : (HO_pad, HO_pad)   bf16  1.0 where two lanes belong to the same
    #                                       categorical head's valid block (segment-sum matrix)
    # latent_ref : (TILE_N, H*F)      f32   post ReLU(LayerNorm) latent (flat)
    # out_ref    : (TILE_N, HO_pad)   f32   reverse-embedding outputs, softmaxed on
    #                                       categorical lanes, raw on continuous lanes

    # ---- hp_num parallel projections: one MXU matmul (bf16 in, f32 accumulate) ----
    lat = jnp.dot(z_ref[...], wp_ref[...],
                  preferred_element_type=jnp.float32) + bp_ref[...]

    # ---- LayerNorm over [hp_num, feat_dim] == the whole flat row (f32 math) ----
    inv_hf = 1.0 / lat.shape[1]
    mean = jnp.sum(lat, axis=1, keepdims=True) * inv_hf
    c = lat - mean                                        # centered once, reused for var
    var = jnp.sum(c * c, axis=1, keepdims=True) * inv_hf
    lat = jnp.maximum(c * jax.lax.rsqrt(var + 1e-5), 0.0)  # LayerNorm (w=1,b=0) + ReLU
    latent_ref[...] = lat

    # ---- reverse embeddings: one block-diagonal, lane-dense (HO_pad % 128 == 0) matmul ----
    raw = jnp.dot(lat.astype(wr_ref.dtype), wr_ref[...],
                  preferred_element_type=jnp.float32) + br_ref[...]

    # ---- fused per-head softmax for categorical heads (padded lanes masked out) ----
    m = cmask_ref[...]                                    # (1, HO_pad) f32 in {0, 1}
    # softmax is shift-invariant per head, so a single global (row) max over the valid
    # categorical lanes is a correct and numerically safe shift for every head.
    gmax = jnp.max(raw + (m - 1.0) * 1e30, axis=1, keepdims=True)
    e = jnp.exp(jnp.minimum(raw - gmax, 0.0)) * m         # 0 on pads / continuous heads
    denom = jnp.dot(e.astype(segp_ref.dtype), segp_ref[...],
                    preferred_element_type=jnp.float32)   # per-lane segment (per-head) sum
    soft = e * pl.reciprocal(denom + (1.0 - m), approx=True)
    out_ref[...] = soft + raw * (1.0 - m)                 # categorical: softmax, else raw


def decoder_pallas(z, packed, *, tile_n=256):
    wp, bp, wr, br, cmask, segp = packed
    n, f = z.shape
    hf = wp.shape[1]
    ho = wr.shape[1]

    # Tile the batch: biggest tile up to 256 rows (MXU-filling), multiple of 8 sublanes.
    tile_n = min(tile_n, _round_up(n, 8))
    n_pad = _round_up(n, tile_n)
    if n_pad != n:
        z = jnp.pad(z, ((0, n_pad - n), (0, 0)))
    z = z.astype(jnp.bfloat16)

    grid = (n_pad // tile_n,)

    flops = 2 * n_pad * (f * hf + hf * ho + ho * ho) + 10 * n_pad * (hf + ho)
    bytes_accessed = (z.size * 2 + wp.size * 2 + wr.size * 2 + segp.size * 2
                      + (bp.size + br.size + cmask.size) * 4
                      + n_pad * (hf + ho) * 4)
    cost = pl.CostEstimate(flops=flops,
                           transcendentals=n_pad * (2 * ho + 1),
                           bytes_accessed=bytes_accessed)

    latent_flat, out_flat = pl.pallas_call(
        decoder_kernel,
        grid_spec=pltpu.PrefetchScalarGridSpec(
            num_scalar_prefetch=0,
            grid=grid,
            in_specs=[
                pl.BlockSpec((tile_n, f), lambda i: (i, 0)),   # z: moves with grid
                pl.BlockSpec((f, hf), lambda i: (0, 0)),       # weights: VMEM-resident
                pl.BlockSpec((1, hf), lambda i: (0, 0)),
                pl.BlockSpec((hf, ho), lambda i: (0, 0)),
                pl.BlockSpec((1, ho), lambda i: (0, 0)),
                pl.BlockSpec((1, ho), lambda i: (0, 0)),
                pl.BlockSpec((ho, ho), lambda i: (0, 0)),
            ],
            out_specs=[
                pl.BlockSpec((tile_n, hf), lambda i: (i, 0)),
                pl.BlockSpec((tile_n, ho), lambda i: (i, 0)),
            ],
        ),
        out_shape=(
            jax.ShapeDtypeStruct((n_pad, hf), jnp.float32),
            jax.ShapeDtypeStruct((n_pad, ho), jnp.float32),
        ),
        compiler_params=pltpu.CompilerParams(
            dimension_semantics=("parallel",),          # v7x: split N tiles across 2 TCs
            vmem_limit_bytes=32 * 1024 * 1024,
        ),
        cost_estimate=cost,
    )(z, wp, bp, wr, br, cmask, segp)
    return latent_flat[:n], out_flat[:n]


# ---------------------------------------------------------------------------
# Parameter construction (deterministic, Xavier-uniform like the module init)
# ---------------------------------------------------------------------------
def xavier_uniform(key, out_dim, in_dim):
    limit = math.sqrt(6.0 / (in_dim + out_dim))
    return jax.random.uniform(key, (out_dim, in_dim), jnp.float32, -limit, limit)


def build_params(key, feat_dim, bounds, categorical_dims):
    hp_num = len(bounds)
    out_dims = [len(bounds[i]["domain"]) if i in categorical_dims else 1
                for i in range(hp_num)]
    max_out = max(out_dims)
    ho_pad = max(128, _round_up(hp_num * max_out, 128))   # lane-dense output width

    keys = jax.random.split(key, 4 * hp_num)
    proj_w, proj_b, rev_w, rev_b = [], [], [], []
    for i in range(hp_num):
        proj_w.append(xavier_uniform(keys[4 * i + 0], feat_dim, feat_dim))     # (F, F)
        proj_b.append(0.01 * jax.random.normal(keys[4 * i + 1], (feat_dim,)))
        rev_w.append(xavier_uniform(keys[4 * i + 2], out_dims[i], feat_dim))   # (out_i, F)
        rev_b.append(0.01 * jax.random.normal(keys[4 * i + 3], (out_dims[i],)))

    # pack projections: column h*F+o of wp is weight row o of head h
    wp = jnp.concatenate([w.T for w in proj_w], axis=1)           # (F, H*F)
    bp = jnp.concatenate(proj_b, axis=0).reshape(1, -1)           # (1, H*F)

    # pack reverse embeddings block-diagonally, padded to a lane-dense width (128)
    wr_np = np.zeros((hp_num * feat_dim, ho_pad), np.float32)
    br_np = np.zeros((ho_pad,), np.float32)
    cmask_np = np.zeros((ho_pad,), np.float32)
    segp_np = np.zeros((ho_pad, ho_pad), np.float32)
    for h in range(hp_num):
        c0 = h * max_out
        wr_np[h * feat_dim:(h + 1) * feat_dim, c0:c0 + out_dims[h]] = np.asarray(rev_w[h]).T
        br_np[c0:c0 + out_dims[h]] = np.asarray(rev_b[h])
        if h in categorical_dims:
            cmask_np[c0:c0 + out_dims[h]] = 1.0
            segp_np[c0:c0 + out_dims[h], c0:c0 + out_dims[h]] = 1.0

    packed = (wp.astype(jnp.bfloat16),
              bp.astype(jnp.float32),
              jnp.asarray(wr_np, jnp.bfloat16),
              jnp.asarray(br_np, jnp.float32).reshape(1, -1),
              jnp.asarray(cmask_np, jnp.float32).reshape(1, -1),
              jnp.asarray(segp_np, jnp.bfloat16))
    raw = dict(proj_w=proj_w, proj_b=proj_b, rev_w=rev_w, rev_b=rev_b)
    return packed, out_dims, max_out, raw


# ---------------------------------------------------------------------------
# Full Decoder.forward  (kernel + minimal glue; softmax already fused in kernel)
# ---------------------------------------------------------------------------
def decoder_forward(z, packed, out_dims, max_out, feat_dim, categorical_dims):
    n = z.shape[0]
    hp_num = len(out_dims)
    latent_flat, out_flat = decoder_pallas(z, packed)
    latent = latent_flat.reshape(n, hp_num, feat_dim)
    out_all = out_flat[:, :hp_num * max_out].reshape(n, hp_num, max_out)

    # One slice per head (hp_num ops); the per-row views below are only needed to
    # reproduce the module's nested list-of-lists return structure.
    heads = [out_all[:, i, :out_dims[i]] for i in range(hp_num)]
    pred = [[heads[i][b:b + 1] for i in range(hp_num)] for b in range(n)]
    return pred, latent


# Pure-JAX fp32 reference (mirrors the PyTorch loops) for a correctness check.
def decoder_reference(z, raw, out_dims, feat_dim, categorical_dims):
    n = z.shape[0]
    hp_num = len(out_dims)
    lat = jnp.stack(
        [jnp.stack([z[b] @ raw["proj_w"][i].T + raw["proj_b"][i]
                    for i in range(hp_num)]) for b in range(n)])       # (N, H, F)
    mean = lat.mean(axis=(1, 2), keepdims=True)
    var = ((lat - mean) ** 2).mean(axis=(1, 2), keepdims=True)
    lat = jnp.maximum((lat - mean) / jnp.sqrt(var + 1e-5), 0.0)
    pred = []
    for b in range(n):
        row = []
        for i in range(hp_num):
            o = (lat[b, i] @ raw["rev_w"][i].T + raw["rev_b"][i]).reshape(1, -1)
            if i in categorical_dims:
                o = jax.nn.softmax(o, axis=1)
            row.append(o)
        pred.append(row)
    return pred, lat


if __name__ == "__main__":
    # Small synthetic config: 4 hyperparameters, two of them categorical.
    feat_dim = 32
    bounds = [
        {"domain": (0.0, 1.0)},            # continuous  -> out dim 1
        {"domain": ["a", "b", "c"]},       # categorical -> out dim 3
        {"domain": (0.0, 10.0)},           # continuous  -> out dim 1
        {"domain": ["p", "q", "r", "s"]},  # categorical -> out dim 4
    ]
    categorical_dims = {1, 3}
    n_nodes = 2                            # z.shape[0]

    key = jax.random.PRNGKey(0)
    kp, kz = jax.random.split(key)
    packed, out_dims, max_out, raw = build_params(kp, feat_dim, bounds, categorical_dims)

    z = jax.random.normal(kz, (n_nodes, feat_dim), jnp.float32)
    edge = jnp.zeros((2, 1), jnp.int32)    # `edge` is unused by Decoder.forward (as in PyTorch)

    pred, latent = decoder_forward(z, packed, out_dims, max_out, feat_dim, categorical_dims)
    jax.block_until_ready(latent)
    for row in pred:
        for o in row:
            jax.block_until_ready(o)

    # correctness vs. fp32 reference of the PyTorch loops
    # (kernel runs its matmuls in bf16 with f32 accumulation -> looser tolerance)
    pred_ref, latent_ref = decoder_reference(z, raw, out_dims, feat_dim, categorical_dims)
    assert jnp.allclose(latent, latent_ref, atol=5e-2, rtol=5e-2)
    for b in range(n_nodes):
        for i in range(len(bounds)):
            assert pred[b][i].shape == (1, out_dims[i])
            assert jnp.allclose(pred[b][i], pred_ref[b][i], atol=5e-2, rtol=5e-2)

    print("KERNEL_OK")
</pallas_src>

<mosaic_0001>
module attributes {stable_mosaic.version = 11 : i64} {
  func.func @decoder_kernel(%arg0: i32, %arg1: memref<8x32xbf16, #tpu.memory_space<vmem>>, %arg2: memref<32x128xbf16, #tpu.memory_space<vmem>>, %arg3: memref<1x128xf32, #tpu.memory_space<vmem>>, %arg4: memref<128x128xbf16, #tpu.memory_space<vmem>>, %arg5: memref<1x128xf32, #tpu.memory_space<vmem>>, %arg6: memref<1x128xf32, #tpu.memory_space<vmem>>, %arg7: memref<128x128xbf16, #tpu.memory_space<vmem>>, %arg8: memref<8x128xf32, #tpu.memory_space<vmem>>, %arg9: memref<8x128xf32, #tpu.memory_space<vmem>>) attributes {dimension_semantics = [#tpu.dimension_semantics<parallel>], iteration_bounds = array<i64: 1>, scalar_prefetch = 0 : i64, scratch_operands = 0 : i64, tpu.core_type = #tpu.core_type<tc>, window_params = [{transform_indices = @transform_0, window_bounds = array<i64: 8, 32>}, {pipeline_mode = #tpu.pipeline_mode<synchronous>, transform_indices = @transform_1, window_bounds = array<i64: 32, 128>}, {pipeline_mode = #tpu.pipeline_mode<synchronous>, transform_indices = @transform_2, window_bounds = array<i64: 1, 128>}, {pipeline_mode = #tpu.pipeline_mode<synchronous>, transform_indices = @transform_3, window_bounds = array<i64: 128, 128>}, {pipeline_mode = #tpu.pipeline_mode<synchronous>, transform_indices = @transform_4, window_bounds = array<i64: 1, 128>}, {pipeline_mode = #tpu.pipeline_mode<synchronous>, transform_indices = @transform_5, window_bounds = array<i64: 1, 128>}, {pipeline_mode = #tpu.pipeline_mode<synchronous>, transform_indices = @transform_6, window_bounds = array<i64: 128, 128>}, {transform_indices = @transform_7, window_bounds = array<i64: 8, 128>}, {transform_indices = @transform_8, window_bounds = array<i64: 8, 128>}]} {
    %c0 = arith.constant 0 : index
    %c0_0 = arith.constant 0 : index
    %0 = vector.load %arg1[%c0, %c0_0] : memref<8x32xbf16, #tpu.memory_space<vmem>>, vector<8x32xbf16>
    %c0_1 = arith.constant 0 : index
    %c0_2 = arith.constant 0 : index
    %1 = vector.load %arg2[%c0_1, %c0_2] : memref<32x128xbf16, #tpu.memory_space<vmem>>, vector<32x128xbf16>
    %cst = arith.constant dense<0.000000e+00> : vector<8x128xf32>
    %2 = tpu.matmul %0, %1, %cst {dimension_numbers = #tpu.dot_dimension_numbers<[1], [0], [0], [1], [0, 0, 1, 1], [], []>} : vector<8x32xbf16>, vector<32x128xbf16>, vector<8x128xf32> -> vector<8x128xf32>
    %c0_3 = arith.constant 0 : index
    %c0_4 = arith.constant 0 : index
    %3 = vector.load %arg3[%c0_3, %c0_4] : memref<1x128xf32, #tpu.memory_space<vmem>>, vector<1x128xf32>
    %4 = vector.broadcast %3 : vector<1x128xf32> to vector<8x128xf32>
    %5 = arith.addf %2, %4 : vector<8x128xf32>
    %cst_5 = arith.constant dense<0.000000e+00> : vector<8xf32>
    %6 = vector.multi_reduction <add>, %5, %cst_5 [1] : vector<8x128xf32> to vector<8xf32>
    %7 = vector.shape_cast %6 : vector<8xf32> to vector<8x1xf32>
    %cst_6 = arith.constant 7.812500e-03 : f32
    %8 = vector.broadcast %cst_6 : f32 to vector<8x1xf32>
    %9 = arith.mulf %7, %8 : vector<8x1xf32>
    %10 = vector.broadcast %9 : vector<8x1xf32> to vector<8x128xf32>
    %11 = arith.subf %5, %10 : vector<8x128xf32>
    %12 = arith.mulf %11, %11 : vector<8x128xf32>
    %cst_7 = arith.constant dense<0.000000e+00> : vector<8xf32>
    %13 = vector.multi_reduction <add>, %12, %cst_7 [1] : vector<8x128xf32> to vector<8xf32>
    %14 = vector.shape_cast %13 : vector<8xf32> to vector<8x1xf32>
    %cst_8 = arith.constant 7.812500e-03 : f32
    %15 = vector.broadcast %cst_8 : f32 to vector<8x1xf32>
    %16 = arith.mulf %14, %15 : vector<8x1xf32>
    %cst_9 = arith.constant 9.99999974E-6 : f32
    %17 = vector.broadcast %cst_9 : f32 to vector<8x1xf32>
    %18 = arith.addf %16, %17 : vector<8x1xf32>
    %19 = math.rsqrt %18 : vector<8x1xf32>
    %20 = vector.broadcast %19 : vector<8x1xf32> to vector<8x128xf32>
    %21 = arith.mulf %11, %20 : vector<8x128xf32>
    %cst_10 = arith.constant 0.000000e+00 : f32
    %22 = vector.broadcast %cst_10 : f32 to vector<8x128xf32>
    %23 = arith.maximumf %21, %22 : vector<8x128xf32>
    %c0_11 = arith.constant 0 : index
    %c0_12 = arith.constant 0 : index
    %24 = vector.load %arg8[%c0_11, %c0_12] : memref<8x128xf32, #tpu.memory_space<vmem>>, vector<8x128xf32>
    tpu.vector_store %arg8[%c0_11, %c0_12], %23 {strides = array<i32>} : memref<8x128xf32, #tpu.memory_space<vmem>>, vector<8x128xf32>,
    %25 = arith.truncf %23 : vector<8x128xf32> to vector<8x128xbf16>
    %c0_13 = arith.constant 0 : index
    %c0_14 = arith.constant 0 : index
    %26 = vector.load %arg4[%c0_13, %c0_14] : memref<128x128xbf16, #tpu.memory_space<vmem>>, vector<128x128xbf16>
    %cst_15 = arith.constant dense<0.000000e+00> : vector<8x128xf32>
    %27 = tpu.matmul %25, %26, %cst_15 {dimension_numbers = #tpu.dot_dimension_numbers<[1], [0], [0], [1], [0, 0, 1, 1], [], []>} : vector<8x128xbf16>, vector<128x128xbf16>, vector<8x128xf32> -> vector<8x128xf32>
    %c0_16 = arith.constant 0 : index
    %c0_17 = arith.constant 0 : index
    %28 = vector.load %arg5[%c0_16, %c0_17] : memref<1x128xf32, #tpu.memory_space<vmem>>, vector<1x128xf32>
    %29 = vector.broadcast %28 : vector<1x128xf32> to vector<8x128xf32>
    %30 = arith.addf %27, %29 : vector<8x128xf32>
    %c0_18 = arith.constant 0 : index
    %c0_19 = arith.constant 0 : index
    %31 = vector.load %arg6[%c0_18, %c0_19] : memref<1x128xf32, #tpu.memory_space<vmem>>, vector<1x128xf32>
    %cst_20 = arith.constant 1.000000e+00 : f32
    %32 = vector.broadcast %cst_20 : f32 to vector<1x128xf32>
    %33 = arith.subf %31, %32 : vector<1x128xf32>
    %cst_21 = arith.constant 1.000000e+30 : f32
    %34 = vector.broadcast %cst_21 : f32 to vector<1x128xf32>
    %35 = arith.mulf %33, %34 : vector<1x128xf32>
    %36 = vector.broadcast %35 : vector<1x128xf32> to vector<8x128xf32>
    %37 = arith.addf %30, %36 : vector<8x128xf32>
    %cst_22 = arith.constant dense<0xFF800000> : vector<8xf32>
    %38 = vector.multi_reduction <maximumf>, %37, %cst_22 [1] : vector<8x128xf32> to vector<8xf32>
    %39 = vector.shape_cast %38 : vector<8xf32> to vector<8x1xf32>
    %40 = vector.broadcast %39 : vector<8x1xf32> to vector<8x128xf32>
    %41 = arith.subf %30, %40 : vector<8x128xf32>
    %cst_23 = arith.constant 0.000000e+00 : f32
    %42 = vector.broadcast %cst_23 : f32 to vector<8x128xf32>
    %43 = arith.minimumf %41, %42 : vector<8x128xf32>
    %44 = math.exp %43 : vector<8x128xf32>
    %45 = vector.broadcast %31 : vector<1x128xf32> to vector<8x128xf32>
    %46 = arith.mulf %44, %45 : vector<8x128xf32>
    %47 = arith.truncf %46 : vector<8x128xf32> to vector<8x128xbf16>
    %c0_24 = arith.constant 0 : index
    %c0_25 = arith.constant 0 : index
    %48 = vector.load %arg7[%c0_24, %c0_25] : memref<128x128xbf16, #tpu.memory_space<vmem>>, vector<128x128xbf16>
    %cst_26 = arith.constant dense<0.000000e+00> : vector<8x128xf32>
    %49 = tpu.matmul %47, %48, %cst_26 {dimension_numbers = #tpu.dot_dimension_numbers<[1], [0], [0], [1], [0, 0, 1, 1], [], []>} : vector<8x128xbf16>, vector<128x128xbf16>, vector<8x128xf32> -> vector<8x128xf32>
    %cst_27 = arith.constant 1.000000e+00 : f32
    %50 = vector.broadcast %cst_27 : f32 to vector<1x128xf32>
    %51 = arith.subf %50, %31 : vector<1x128xf32>
    %52 = vector.broadcast %51 : vector<1x128xf32> to vector<8x128xf32>
    %53 = arith.addf %49, %52 : vector<8x128xf32>
    %54 = tpu.reciprocal %53 {approx = true} : vector<8x128xf32> -> vector<8x128xf32>
    %55 = arith.mulf %46, %54 : vector<8x128xf32>
    %cst_28 = arith.constant 1.000000e+00 : f32
    %56 = vector.broadcast %cst_28 : f32 to vector<1x128xf32>
    %57 = arith.subf %56, %31 : vector<1x128xf32>
    %58 = vector.broadcast %57 : vector<1x128xf32> to vector<8x128xf32>
    %59 = arith.mulf %30, %58 : vector<8x128xf32>
    %60 = arith.addf %55, %59 : vector<8x128xf32>
    %c0_29 = arith.constant 0 : index
    %c0_30 = arith.constant 0 : index
    %61 = vector.load %arg9[%c0_29, %c0_30] : memref<8x128xf32, #tpu.memory_space<vmem>>, vector<8x128xf32>
    tpu.vector_store %arg9[%c0_29, %c0_30], %60 {strides = array<i32>} : memref<8x128xf32, #tpu.memory_space<vmem>>, vector<8x128xf32>,
    return
  }
  func.func @transform_0(%arg0: i32) -> (i32, i32) {
    %c0_i32 = arith.constant 0 : i32
    %c0_i32_0 = arith.constant 0 : i32
    return %arg0, %c0_i32 : i32, i32
  }
  func.func @transform_1(%arg0: i32) -> (i32, i32) {
    %c0_i32 = arith.constant 0 : i32
    %c0_i32_0 = arith.constant 0 : i32
    %c0_i32_1 = arith.constant 0 : i32
    return %c0_i32, %c0_i32_0 : i32, i32
  }
  func.func @transform_2(%arg0: i32) -> (i32, i32) {
    %c0_i32 = arith.constant 0 : i32
    %c0_i32_0 = arith.constant 0 : i32
    %c0_i32_1 = arith.constant 0 : i32
    return %c0_i32, %c0_i32_0 : i32, i32
  }
  func.func @transform_3(%arg0: i32) -> (i32, i32) {
    %c0_i32 = arith.constant 0 : i32
    %c0_i32_0 = arith.constant 0 : i32
    %c0_i32_1 = arith.constant 0 : i32
    return %c0_i32, %c0_i32_0 : i32, i32
  }
  func.func @transform_4(%arg0: i32) -> (i32, i32) {
    %c0_i32 = arith.constant 0 : i32
    %c0_i32_0 = arith.constant 0 : i32
    %c0_i32_1 = arith.constant 0 : i32
    return %c0_i32, %c0_i32_0 : i32, i32
  }
  func.func @transform_5(%arg0: i32) -> (i32, i32) {
    %c0_i32 = arith.constant 0 : i32
    %c0_i32_0 = arith.constant 0 : i32
    %c0_i32_1 = arith.constant 0 : i32
    return %c0_i32, %c0_i32_0 : i32, i32
  }
  func.func @transform_6(%arg0: i32) -> (i32, i32) {
    %c0_i32 = arith.constant 0 : i32
    %c0_i32_0 = arith.constant 0 : i32
    %c0_i32_1 = arith.constant 0 : i32
    return %c0_i32, %c0_i32_0 : i32, i32
  }
  func.func @transform_7(%arg0: i32) -> (i32, i32) {
    %c0_i32 = arith.constant 0 : i32
    %c0_i32_0 = arith.constant 0 : i32
    return %arg0, %c0_i32 : i32, i32
  }
  func.func @transform_8(%arg0: i32) -> (i32, i32) {
    %c0_i32 = arith.constant 0 : i32
    %c0_i32_0 = arith.constant 0 : i32
    return %arg0, %c0_i32 : i32, i32
  }
}

</mosaic_0001>

<llo_original>
// kernel: tpu_custom_call.1
$region0: #{tpu_custom_call.1}
  #allocation0 [shape = 'u32[]', space=smem, size = 0x4, offset = 0x4, fixed_abs, tag = 'smem constant byte address 0x4 - core index']
  #allocation1 [shape = 'u32[144,128]{1,0:T(1,128)}', space=vmem, size = 0x12000, scoped, tag = 'internal scratch']
  %s0 = inlined_call_operand.hbm [shape: bf16[8,32], index: 0, kind: input, shape index: {}]
  %s1 = inlined_call_operand.hbm [shape: bf16[32,128], index: 1, kind: input, shape index: {}]
  %s2 = inlined_call_operand.vmem [shape: f32[1,128], index: 2, kind: input, shape index: {}]
  %s3 = inlined_call_operand.hbm [shape: bf16[128,128], index: 3, kind: input, shape index: {}]
  %s4 = inlined_call_operand.vmem [shape: f32[1,128], index: 4, kind: input, shape index: {}]
  %s5 = inlined_call_operand.vmem [shape: f32[1,128], index: 5, kind: input, shape index: {}]
  %s6 = inlined_call_operand.hbm [shape: bf16[128,128], index: 6, kind: input, shape index: {}]
  %s7 = inlined_call_operand.hbm [shape: f32[8,128], index: 7, kind: output, shape index: {0}]
  %s8 = inlined_call_operand.hbm [shape: f32[8,128], index: 8, kind: output, shape index: {1}]
  %9 = xla_tuple %s7, %s8
  %s10 = sld [smem:[#allocation0]]
  $region62: #{tpu_custom_call.1} parent=0
    _
  %s12 = ssub.s32 1, %s10
  %s13 = scalar_select 0, %s12, %s10
  $region1: #{tpu_custom_call.1} parent=0
    #allocation2 [shape = 'u8[2048]{0}', space=vmem, size = 0x800, scoped, tag = 'input window, operand 0, single buffered']
    #allocation3 [shape = 's32[1]{0}', space=sflag, size = 0x4, scoped, tag = 'scoped memory for tpu_custom_call.1']
    #allocation4 [shape = 's32[1]{0}', space=sflag, size = 0x4, scoped, tag = 'scoped memory for tpu_custom_call.1']
    #allocation5 [shape = 'u8[8192]{0}', space=vmem, size = 0x2000, scoped, tag = 'input window, operand 1, single buffered']
    #allocation6 [shape = 's32[1]{0}', space=sflag, size = 0x4, scoped, tag = 'scoped memory for tpu_custom_call.1']
    #allocation7 [shape = 'u8[32768]{0}', space=vmem, size = 0x8000, scoped, tag = 'input window, operand 3, single buffered']
    #allocation8 [shape = 'u8[32768]{0}', space=vmem, size = 0x8000, scoped, tag = 'input window, operand 6, single buffered']
    #allocation9 [shape = 's32[1]{0}', space=sflag, size = 0x4, scoped, tag = 'scoped memory for tpu_custom_call.1']
    #allocation10 [shape = 'u8[4096]{0}', space=vmem, size = 0x1000, scoped, tag = 'output window, operand 0, single buffered']
    #allocation11 [shape = 'u8[4096]{0}', space=vmem, size = 0x1000, scoped, tag = 'output window, operand 1, single buffered']
    #allocation12 [shape = 's32[1]{0}', space=sflag, size = 0x4, scoped, tag = 'scoped memory for tpu_custom_call.1']
    %14 = vsyncpa [#allocation3], 0
    %15 = vsyncpa [#allocation6], 0
    %16 = vsyncpa [#allocation9], 0
    %17 = vsyncpa [#allocation4], 0
    %18 = vsyncpa [#allocation12], 0
    // Predicated region
    $region2: #{tpu_custom_call.1} parent=1 // pred_check
      _
    $region3: #{tpu_custom_call.1} parent=1 // pred_check_branch
      %20 = sbr.rel (0) target = $region5
    $region4: #{tpu_custom_call.1} parent=1 // pred_region
      %s22 = ssub.s32 64, 64
      %23 = vsyncadd [#allocation3], %s22
      %s25 = sshll.u32 [#allocation2], 4
      %s26 = int_to_ptr.vmem [resolvable:$true] %s25
      %28 = dma.hbm_to_vmem [thread:$0]  %s0, 64, %s26, [#allocation3]
    $region5: #{tpu_custom_call.1} parent=1 // pred_fallthru
      _
    // Predicated region
    $region6: #{tpu_custom_call.1} parent=1 // pred_check
      _
    $region7: #{tpu_custom_call.1} parent=1 // pred_check_branch
      %30 = sbr.rel (0) target = $region9
    $region8: #{tpu_custom_call.1} parent=1 // pred_region
      %s32 = ssub.s32 256, 256
      %33 = vsyncadd [#allocation6], %s32
      %s34 = sshll.u32 [#allocation5], 4
      %s35 = int_to_ptr.vmem [resolvable:$true] %s34
      %40 = dma.hbm_to_vmem [thread:$0]  %s1, 256, %s35, [#allocation6], 64, 64, 4
    $region9: #{tpu_custom_call.1} parent=1 // pred_fallthru
      _
    // Predicated region
    $region10: #{tpu_custom_call.1} parent=1 // pred_check
      _
    $region11: #{tpu_custom_call.1} parent=1 // pred_check_branch
      %42 = sbr.rel (0) target = $region13
    $region12: #{tpu_custom_call.1} parent=1 // pred_region
      _
    $region13: #{tpu_custom_call.1} parent=1 // pred_fallthru
      _
    // Predicated region
    $region14: #{tpu_custom_call.1} parent=1 // pred_check
      _
    $region15: #{tpu_custom_call.1} parent=1 // pred_check_branch
      %44 = sbr.rel (0) target = $region17
    $region16: #{tpu_custom_call.1} parent=1 // pred_region
      %s46 = ssub.s32 1024, 1024
      %47 = vsyncadd [#allocation6], %s46
      %s48 = sshll.u32 [#allocation7], 4
      %s49 = int_to_ptr.vmem [resolvable:$true] %s48
      %54 = dma.hbm_to_vmem [thread:$0]  %s3, 1024, %s49, [#allocation6], 64, 64, 4
    $region17: #{tpu_custom_call.1} parent=1 // pred_fallthru
      _
    // Predicated region
    $region18: #{tpu_custom_call.1} parent=1 // pred_check
      _
    $region19: #{tpu_custom_call.1} parent=1 // pred_check_branch
      %56 = sbr.rel (0) target = $region21
    $region20: #{tpu_custom_call.1} parent=1 // pred_region
      _
    $region21: #{tpu_custom_call.1} parent=1 // pred_fallthru
      _
    // Predicated region
    $region22: #{tpu_custom_call.1} parent=1 // pred_check
      _
    $region23: #{tpu_custom_call.1} parent=1 // pred_check_branch
      %58 = sbr.rel (0) target = $region25
    $region24: #{tpu_custom_call.1} parent=1 // pred_region
      _
    $region25: #{tpu_custom_call.1} parent=1 // pred_fallthru
      _
    // Predicated region
    $region26: #{tpu_custom_call.1} parent=1 // pred_check
      _
    $region27: #{tpu_custom_call.1} parent=1 // pred_check_branch
      %60 = sbr.rel (0) target = $region29
    $region28: #{tpu_custom_call.1} parent=1 // pred_region
      %s62 = ssub.s32 1024, 1024
      %63 = vsyncadd [#allocation9], %s62
      %s64 = sshll.u32 [#allocation8], 4
      %s65 = int_to_ptr.vmem [resolvable:$true] %s64
      %70 = dma.hbm_to_vmem [thread:$0]  %s6, 1024, %s65, [#allocation9], 64, 64, 4
    $region29: #{tpu_custom_call.1} parent=1 // pred_fallthru
      _
    // Predicated region
    $region30: #{tpu_custom_call.1} parent=1 // pred_check
      _
    $region31: #{tpu_custom_call.1} parent=1 // pred_check_branch
      %72 = sbr.rel (0) target = $region33
    $region32: #{tpu_custom_call.1} parent=1 // pred_region
      %73 = dma.done [#allocation3], 64
    $region33: #{tpu_custom_call.1} parent=1 // pred_fallthru
      _
    // Predicated region
    $region34: #{tpu_custom_call.1} parent=1 // pred_check
      _
    $region35: #{tpu_custom_call.1} parent=1 // pred_check_branch
      %75 = sbr.rel (0) target = $region37
    $region36: #{tpu_custom_call.1} parent=1 // pred_region
      %76 = dma.done [#allocation6], 256
    $region37: #{tpu_custom_call.1} parent=1 // pred_fallthru
      _
    // Predicated region
    $region38: #{tpu_custom_call.1} parent=1 // pred_check
      _
    $region39: #{tpu_custom_call.1} parent=1 // pred_check_branch
      %78 = sbr.rel (0) target = $region41
    $region40: #{tpu_custom_call.1} parent=1 // pred_region
      %79 = dma.done [#allocation6], 1024
    $region41: #{tpu_custom_call.1} parent=1 // pred_fallthru
      _
    // Predicated region
    $region42: #{tpu_custom_call.1} parent=1 // pred_check
      _
    $region43: #{tpu_custom_call.1} parent=1 // pred_check_branch
      %81 = sbr.rel (0) target = $region45
    $region44: #{tpu_custom_call.1} parent=1 // pred_region
      %82 = dma.done [#allocation9], 1024
    $region45: #{tpu_custom_call.1} parent=1 // pred_fallthru
      _
    %v84 = vld [vmem:[#allocation2] sm:$0xf]
    %v85 = vld [vmem:[#allocation5] sm:$0xf]
    %v86 = vld [vmem:[#allocation5 + $0x4] sm:$0xf]
    %v87 = vld [vmem:[#allocation5 + $0x8] sm:$0xf]
    %v88 = vld [vmem:[#allocation5 + $0xc] sm:$0xf]
    %v89 = vld [vmem:[%s2] sm:$0x1]
    %v91 = vlaneseq
    %v92 = vshrl.u32 %v91, 7
    %v93 = vsub.s32 0, %v92
    %v94 = vrot.slane %v89, %v93
    %v100 = vunpack.c.l.b16 %v85
    %v101 = vunpack.c.l.b16 %v86
    %v102 = vunpack.c.l.b16 %v87
    %v103 = vunpack.c.l.b16 %v88
    %v104 = vpack.c.b16 %v101, %v100
    %v105 = vpack.c.b16 %v103, %v102
    %vm108 = vcmask 261120
    %v110 = vsel %vm108, %v84, 0
    %112 = vmatprep.subr.bf16.mxu0 0
    %113 = vmatpush1.bf16.msra.mxu0 %v104
    %114 = vmatprep.subr.bf16.mxu0 0
    %115 = vmatpush1.bf16.msra.mxu0 %v105
    %116 = vmatprep.subr.bf16.mxu0 0
    %117 = vmatpush1.bf16.msra.mxu0 0
    %118 = vmatprep.subr.bf16.mxu0 0
    %119 = vmatpush1.bf16.msra.mxu0 0
    %120 = vmatprep.subr.bf16.mxu0 0
    %121 = vmatpush1.bf16.msra.mxu0 0
    %122 = vmatprep.subr.bf16.mxu0 0
    %123 = vmatpush1.bf16.msra.mxu0 0
    %124 = vmatprep.subr.bf16.mxu0 0
    %125 = vmatpush1.bf16.msra.mxu0 0
    %126 = vmatprep.subr.bf16.mxu0 0
    %127 = vmatpush1.bf16.msra.mxu0 0
    %128 = vmatprep.subr.bf16.mxu0 0
    %129 = vmatpush1.bf16.msra.mxu0 0
    %130 = vmatprep.subr.bf16.mxu0 0
    %131 = vmatpush1.bf16.msra.mxu0 0
    %132 = vmatprep.subr.bf16.mxu0 0
    %133 = vmatpush1.bf16.msra.mxu0 0
    %134 = vmatprep.subr.bf16.mxu0 0
    %135 = vmatpush1.bf16.msra.mxu0 0
    %136 = vmatprep.subr.bf16.mxu0 0
    %137 = vmatpush1.bf16.msra.mxu0 0
    %138 = vmatprep.subr.bf16.mxu0 0
    %139 = vmatpush1.bf16.msra.mxu0 0
    %140 = vmatprep.subr.bf16.mxu0 0
    %141 = vmatpush1.bf16.msra.mxu0 0
    %142 = vmatprep.subr.bf16.mxu0 0
    %143 = vmatpush1.bf16.msra.mxu0 0
    %144 = vmatprep.mubr.bf16.mxu0 0
    %145 = vmatmul.mubr.bf16.gmra.mrb[0].mxu0 %v110
    %v146 = vpop.f32.mrb[0].mxu0
    %v147 = vadd.f32 %v94, %v146
    %v148 = vpop.f32.mrb[0].mxu0
    %v149 = vpop.f32.mrb[0].mxu0
    %v150 = vpop.f32.mrb[0].mxu0
    %151 = vdwg.mxu0
    %152 = vadd.xlane.f32.xlu0 %v147
    %v153 = vpop.xlane.xlu0 %152
    %v154 = vmul.f32 %v153, 0.0078125
    %v155 = vsub.f32 %v147, %v154
    %v156 = vmul.f32 %v155, %v155
    %157 = vadd.xlane.f32.xlu0 %v156
    %v158 = vpop.xlane.xlu0 %157
    %v159 = vmul.f32 %v158, 0.0078125
    %v160 = vadd.f32 %v159, 1e-05
    %v161 = vrsqrt.pop %v160
    %v162 = vmul.f32 %v155, %v161
    %v163 = vmax.f32 %v162, 0.0
    %164 = vst [vmem:[#allocation10] sm:$0xff] %v163
    %v165 = vpack.c.bf16 %v163, %v163
    %v166 = vld [vmem:[#allocation7] sm:$0xf]
    %v167 = vld [vmem:[#allocation7 + $0x4] sm:$0xf]
    %v168 = vld [vmem:[#allocation7 + $0x8] sm:$0xf]
    %v169 = vld [vmem:[#allocation7 + $0xc] sm:$0xf]
    %v170 = vld [vmem:[#allocation7 + $0x10] sm:$0xf]
    %v171 = vld [vmem:[#allocation7 + $0x14] sm:$0xf]
    %v172 = vld [vmem:[#allocation7 + $0x18] sm:$0xf]
    %v173 = vld [vmem:[#allocation7 + $0x1c] sm:$0xf]
    %v174 = vld [vmem:[#allocation7 + $0x20] sm:$0xf]
    %v175 = vld [vmem:[#allocation7 + $0x24] sm:$0xf]
    %v176 = vld [vmem:[#allocation7 + $0x28] sm:$0xf]
    %v177 = vld [vmem:[#allocation7 + $0x2c] sm:$0xf]
    %v178 = vld [vmem:[#allocation7 + $0x30] sm:$0xf]
    %v179 = vld [vmem:[#allocation7 + $0x34] sm:$0xf]
    %v180 = vld [vmem:[#allocation7 + $0x38] sm:$0xf]
    %v181 = vld [vmem:[#allocation7 + $0x3c] sm:$0xf]
    %v182 = vld [vmem:[%s4] sm:$0x1]
    %v184 = vlaneseq
    %v185 = vshrl.u32 %v184, 7
    %v186 = vsub.s32 0, %v185
    %v187 = vrot.slane %v182, %v186
    %v205 = vunpack.c.l.b16 %v166
    %v206 = vunpack.c.l.b16 %v167
    %v207 = vunpack.c.l.b16 %v168
    %v208 = vunpack.c.l.b16 %v169
    %v209 = vunpack.c.l.b16 %v170
    %v210 = vunpack.c.l.b16 %v171
    %v211 = vunpack.c.l.b16 %v172
    %v212 = vunpack.c.l.b16 %v173
    %v213 = vunpack.c.l.b16 %v174
    %v214 = vunpack.c.l.b16 %v175
    %v215 = vunpack.c.l.b16 %v176
    %v216 = vunpack.c.l.b16 %v177
    %v217 = vunpack.c.l.b16 %v178
    %v218 = vunpack.c.l.b16 %v179
    %v219 = vunpack.c.l.b16 %v180
    %v220 = vunpack.c.l.b16 %v181
    %v221 = vpack.c.b16 %v206, %v205
    %v222 = vpack.c.b16 %v208, %v207
    %v223 = vpack.c.b16 %v210, %v209
    %v224 = vpack.c.b16 %v212, %v211
    %v225 = vpack.c.b16 %v214, %v213
    %v226 = vpack.c.b16 %v216, %v215
    %v227 = vpack.c.b16 %v218, %v217
    %v228 = vpack.c.b16 %v220, %v219
    %237 = vmatprep.subr.bf16.mxu0 0
    %238 = vmatpush1.bf16.msra.mxu0 %v221
    %239 = vmatprep.subr.bf16.mxu0 0
    %240 = vmatpush1.bf16.msra.mxu0 %v222
    %241 = vmatprep.subr.bf16.mxu0 0
    %242 = vmatpush1.bf16.msra.mxu0 %v223
    %243 = vmatprep.subr.bf16.mxu0 0
    %244 = vmatpush1.bf16.msra.mxu0 %v224
    %245 = vmatprep.subr.bf16.mxu0 0
    %246 = vmatpush1.bf16.msra.mxu0 %v225
    %247 = vmatprep.subr.bf16.mxu0 0
    %248 = vmatpush1.bf16.msra.mxu0 %v226
    %249 = vmatprep.subr.bf16.mxu0 0
    %250 = vmatpush1.bf16.msra.mxu0 %v227
    %251 = vmatprep.subr.bf16.mxu0 0
    %252 = vmatpush1.bf16.msra.mxu0 %v228
    %253 = vmatprep.subr.bf16.mxu0 0
    %254 = vmatpush1.bf16.msra.mxu0 0
    %255 = vmatprep.subr.bf16.mxu0 0
    %256 = vmatpush1.bf16.msra.mxu0 0
    %257 = vmatprep.subr.bf16.mxu0 0
    %258 = vmatpush1.bf16.msra.mxu0 0
    %259 = vmatprep.subr.bf16.mxu0 0
    %260 = vmatpush1.bf16.msra.mxu0 0
    %261 = vmatprep.subr.bf16.mxu0 0
    %262 = vmatpush1.bf16.msra.mxu0 0
    %263 = vmatprep.subr.bf16.mxu0 0
    %264 = vmatpush1.bf16.msra.mxu0 0
    %265 = vmatprep.subr.bf16.mxu0 0
    %266 = vmatpush1.bf16.msra.mxu0 0
    %267 = vmatprep.subr.bf16.mxu0 0
    %268 = vmatpush1.bf16.msra.mxu0 0
    %269 = vmatprep.mubr.bf16.mxu0 0
    %270 = vmatmul.mubr.bf16.gmra.mrb[0].mxu0 %v165
    %v271 = vpop.f32.mrb[0].mxu0
    %v272 = vadd.f32 %v187, %v271
    %v273 = vpop.f32.mrb[0].mxu0
    %v274 = vpop.f32.mrb[0].mxu0
    %v275 = vpop.f32.mrb[0].mxu0
    %276 = vdwg.mxu0
    %v277 = vld [vmem:[%s5] sm:$0x1]
    %v278 = vsub.f32 %v277, 1.0
    %v279 = vmul.f32 %v278, 1e+30
    %v281 = vlaneseq
    %v282 = vshrl.u32 %v281, 7
    %v283 = vsub.s32 0, %v282
    %v284 = vrot.slane %v279, %v283
    %v286 = vadd.f32 %v272, %v284
    %287 = vmax.xlane.f32.xlu0 %v286
    %v288 = vpop.xlane.xlu0 %287
    %v289 = vsub.f32 %v272, %v288
    %v290 = vmin.f32 %v289, 0.0
    %v291 = vmul.f32 %v290, 1.442695
    %v292 = vpow.pop %v291
    %v294 = vlaneseq
    %v295 = vshrl.u32 %v294, 7
    %v296 = vsub.s32 0, %v295
    %v297 = vrot.slane %v277, %v296
    %v299 = vmul.f32 %v292, %v297
    %v300 = vpack.c.bf16 %v299, %v299
    %v301 = vld [vmem:[#allocation8] sm:$0xf]
    %v302 = vld [vmem:[#allocation8 + $0x4] sm:$0xf]
    %v303 = vld [vmem:[#allocation8 + $0x8] sm:$0xf]
    %v304 = vld [vmem:[#allocation8 + $0xc] sm:$0xf]
    %v305 = vld [vmem:[#allocation8 + $0x10] sm:$0xf]
    %v306 = vld [vmem:[#allocation8 + $0x14] sm:$0xf]
    %v307 = vld [vmem:[#allocation8 + $0x18] sm:$0xf]
    %v308 = vld [vmem:[#allocation8 + $0x1c] sm:$0xf]
    %v309 = vld [vmem:[#allocation8 + $0x20] sm:$0xf]
    %v310 = vld [vmem:[#allocation8 + $0x24] sm:$0xf]
    %v311 = vld [vmem:[#allocation8 + $0x28] sm:$0xf]
    %v312 = vld [vmem:[#allocation8 + $0x2c] sm:$0xf]
    %v313 = vld [vmem:[#allocation8 + $0x30] sm:$0xf]
    %v314 = vld [vmem:[#allocation8 + $0x34] sm:$0xf]
    %v315 = vld [vmem:[#allocation8 + $0x38] sm:$0xf]
    %v316 = vld [vmem:[#allocation8 + $0x3c] sm:$0xf]
    %v317 = vsub.f32 1.0, %v277
    %v319 = vlaneseq
    %v320 = vshrl.u32 %v319, 7
    %v321 = vsub.s32 0, %v320
    %v322 = vrot.slane %v317, %v321
    %v340 = vunpack.c.l.b16 %v301
    %v341 = vunpack.c.l.b16 %v302
    %v342 = vunpack.c.l.b16 %v303
    %v343 = vunpack.c.l.b16 %v304
    %v344 = vunpack.c.l.b16 %v305
    %v345 = vunpack.c.l.b16 %v306
    %v346 = vunpack.c.l.b16 %v307
    %v347 = vunpack.c.l.b16 %v308
    %v348 = vunpack.c.l.b16 %v309
    %v349 = vunpack.c.l.b16 %v310
    %v350 = vunpack.c.l.b16 %v311
    %v351 = vunpack.c.l.b16 %v312
    %v352 = vunpack.c.l.b16 %v313
    %v353 = vunpack.c.l.b16 %v314
    %v354 = vunpack.c.l.b16 %v315
    %v355 = vunpack.c.l.b16 %v316
    %v356 = vpack.c.b16 %v341, %v340
    %v357 = vpack.c.b16 %v343, %v342
    %v358 = vpack.c.b16 %v345, %v344
    %v359 = vpack.c.b16 %v347, %v346
    %v360 = vpack.c.b16 %v349, %v348
    %v361 = vpack.c.b16 %v351, %v350
    %v362 = vpack.c.b16 %v353, %v352
    %v363 = vpack.c.b16 %v355, %v354
    %372 = vmatprep.subr.bf16.mxu0 0
    %373 = vmatpush1.bf16.msra.mxu0 %v356
    %374 = vmatprep.subr.bf16.mxu0 0
    %375 = vmatpush1.bf16.msra.mxu0 %v357
    %376 = vmatprep.subr.bf16.mxu0 0
    %377 = vmatpush1.bf16.msra.mxu0 %v358
    %378 = vmatprep.subr.bf16.mxu0 0
    %379 = vmatpush1.bf16.msra.mxu0 %v359
    %380 = vmatprep.subr.bf16.mxu0 0
    %381 = vmatpush1.bf16.msra.mxu0 %v360
    %382 = vmatprep.subr.bf16.mxu0 0
    %383 = vmatpush1.bf16.msra.mxu0 %v361
    %384 = vmatprep.subr.bf16.mxu0 0
    %385 = vmatpush1.bf16.msra.mxu0 %v362
    %386 = vmatprep.subr.bf16.mxu0 0
    %387 = vmatpush1.bf16.msra.mxu0 %v363
    %388 = vmatprep.subr.bf16.mxu0 0
    %389 = vmatpush1.bf16.msra.mxu0 0
    %390 = vmatprep.subr.bf16.mxu0 0
    %391 = vmatpush1.bf16.msra.mxu0 0
    %392 = vmatprep.subr.bf16.mxu0 0
    %393 = vmatpush1.bf16.msra.mxu0 0
    %394 = vmatprep.subr.bf16.mxu0 0
    %395 = vmatpush1.bf16.msra.mxu0 0
    %396 = vmatprep.subr.bf16.mxu0 0
    %397 = vmatpush1.bf16.msra.mxu0 0
    %398 = vmatprep.subr.bf16.mxu0 0
    %399 = vmatpush1.bf16.msra.mxu0 0
    %400 = vmatprep.subr.bf16.mxu0 0
    %401 = vmatpush1.bf16.msra.mxu0 0
    %402 = vmatprep.subr.bf16.mxu0 0
    %403 = vmatpush1.bf16.msra.mxu0 0
    %404 = vmatprep.mubr.bf16.mxu0 0
    %405 = vmatmul.mubr.bf16.gmra.mrb[0].mxu0 %v300
    %v406 = vpop.f32.mrb[0].mxu0
    %v407 = vadd.f32 %v322, %v406
    %v408 = vpop.f32.mrb[0].mxu0
    %v409 = vpop.f32.mrb[0].mxu0
    %v410 = vpop.f32.mrb[0].mxu0
    %411 = vdwg.mxu0
    %v412 = vrcp.pop %v407
    %v413 = vmul.f32 %v299, %v412
    %v414 = vmul.f32 %v272, %v322
    %v415 = vadd.f32 %v413, %v414
    %416 = vst [vmem:[#allocation11] sm:$0xff] %v415
    // Predicated region
    $region46: #{tpu_custom_call.1} parent=1 // pred_check
      _
    $region47: #{tpu_custom_call.1} parent=1 // pred_check_branch
      %418 = sbr.rel (0) target = $region49
    $region48: #{tpu_custom_call.1} parent=1 // pred_region
      %s420 = ssub.s32 128, 128
      %421 = vsyncadd [#allocation4], %s420
      %s423 = sshll.u32 [#allocation10], 4
      %s424 = int_to_ptr.vmem [resolvable:$true] %s423
      %426 = dma.vmem_to_hbm [thread:$0]  %s424, 128, %s7, [#allocation4]
    $region49: #{tpu_custom_call.1} parent=1 // pred_fallthru
      _
    // Predicated region
    $region50: #{tpu_custom_call.1} parent=1 // pred_check
      _
    $region51: #{tpu_custom_call.1} parent=1 // pred_check_branch
      %428 = sbr.rel (0) target = $region53
    $region52: #{tpu_custom_call.1} parent=1 // pred_region
      %s430 = ssub.s32 128, 128
      %431 = vsyncadd [#allocation12], %s430
      %s433 = sshll.u32 [#allocation11], 4
      %s434 = int_to_ptr.vmem [resolvable:$true] %s433
      %436 = dma.vmem_to_hbm [thread:$0]  %s434, 128, %s8, [#allocation12]
    $region53: #{tpu_custom_call.1} parent=1 // pred_fallthru
      _
    // Predicated region
    $region54: #{tpu_custom_call.1} parent=1 // pred_check
      _
    $region55: #{tpu_custom_call.1} parent=1 // pred_check_branch
      %438 = sbr.rel (0) target = $region57
    $region56: #{tpu_custom_call.1} parent=1 // pred_region
      %439 = dma.done [#allocation4], 128
    $region57: #{tpu_custom_call.1} parent=1 // pred_fallthru
      _
    // Predicated region
    $region58: #{tpu_custom_call.1} parent=1 // pred_check
      _
    $region59: #{tpu_custom_call.1} parent=1 // pred_check_branch
      %441 = sbr.rel (0) target = $region61
    $region60: #{tpu_custom_call.1} parent=1 // pred_region
      %442 = dma.done [#allocation12], 128
    $region61: #{tpu_custom_call.1} parent=1 // pred_fallthru
      _
    %443 = vsyncpa [#allocation3], 1
    %444 = vsyncpa [#allocation6], 1
    %445 = vsyncpa [#allocation9], 1
    %446 = vsyncpa [#allocation4], 1
    %447 = vsyncpa [#allocation12], 1

</llo_original>
